<compile_context>
chip_gen: v5e
topology: v5e:2x2
jax: 0.10.0
libtpu: 0.0.40
codegen_flags: <defaults>
</compile_context>

<pallas_src>
import functools
import math

import jax
import jax.numpy as jnp
from jax.experimental import pallas as pl
from jax.experimental.pallas import tpu as pltpu

# int8 quantization range (torch default for qint8 symmetric)
QMIN = -128.0
QMAX = 127.0

_TARGET_TILE_BYTES = 4 * 1024 * 1024   # ~4 MiB per input/output tile
_VMEM_CAP_BYTES = 48 * 1024 * 1024     # stay well under v7x's 64 MiB/TC VMEM
_VMEM_FLOOR_BYTES = 16 * 1024 * 1024


def _qop_add_fakequant_kernel(params_ref, x_ref, y_ref, o_ref):
    """out = fake_quant(x + y); params = [inv_scale, scale, qmin-zp, qmax-zp]."""
    # op(*args): elementwise addition
    out = x_ref[...] + y_ref[...]

    # acts_quantizer(out): per-tensor affine fake quantization with the
    # zero point folded into the clamp bounds (exact for integer-valued zp).
    inv_scale = params_ref[0]
    scale = params_ref[1]
    lo = params_ref[2]
    hi = params_ref[3]
    q = jnp.clip(jnp.round(out * inv_scale), lo, hi)
    o_ref[...] = q * scale
    # TODO(synk): acts_quantizer.pre_observe/post_observe (running-stat
    # bookkeeping) have no output effect in QUANT_EVAL and are omitted.


@functools.lru_cache(maxsize=None)
def _tensorcores_per_chip():
    """2 on v7x (2 TCs/chip), 1 on v5e/v6e."""
    try:
        kind = jax.devices()[0].device_kind.lower()
    except Exception:
        return 1
    return 2 if any(tag in kind for tag in ("v7", "tpu7", "7x")) else 1


@functools.lru_cache(maxsize=None)
def _grid_semantics():
    """Pick grid dimension semantics once per process.

    Plain "parallel" vs "arbitrary" is measured near-identical and may not
    split the grid across v7x's two TensorCores; CORE_PARALLEL does.  Probe a
    tiny kernel so we fall back cleanly if the enum / lowering is unsupported.
    """
    core_parallel = getattr(pltpu, "CORE_PARALLEL", None)
    if core_parallel is None or _tensorcores_per_chip() < 2:
        return ("parallel",)

    def _probe(x_ref, o_ref):
        o_ref[...] = x_ref[...] + 1.0

    try:
        fn = pl.pallas_call(
            _probe,
            out_shape=jax.ShapeDtypeStruct((16, 128), jnp.float32),
            grid_spec=pltpu.PrefetchScalarGridSpec(
                num_scalar_prefetch=0,
                grid=(2,),
                in_specs=[pl.BlockSpec((8, 128), lambda i: (i, 0))],
                out_specs=pl.BlockSpec((8, 128), lambda i: (i, 0)),
            ),
            compiler_params=pltpu.CompilerParams(
                dimension_semantics=(core_parallel,)),
        )
        jax.block_until_ready(fn(jnp.zeros((16, 128), jnp.float32)))
        return (core_parallel,)
    except Exception:
        return ("parallel",)


def _choose_layout(shape):
    """Pick a lane-dense 2D slab (rows, cols) with cols a multiple of 128."""
    total = math.prod(shape)
    # Preferred: cols a multiple of 128 and >= 8 rows (full (8,128) vregs,
    # unmasked full-lane stores).
    for lanes in (2048, 1024, 512, 256, 128):
        if total % lanes == 0 and total // lanes >= 8:
            return total // lanes, lanes
    # Still lane-dense but rows < 8 (full-extent row blocks are legal);
    # maximize rows for sublane utilization.
    for lanes in (128, 256, 512, 1024, 2048):
        if total % lanes == 0:
            return total // lanes, lanes
    # Awkward totals with no factor of 128: masked partial stores are
    # unavoidable.  Use the widest divisor <= 2048 as the lane axis (better
    # than the old H*W fallback, which could be < 128 lanes).
    best = 1
    for d in range(2, min(total, 2048) + 1):
        if total % d == 0:
            best = d
    return total // best, best


def _choose_block_rows(rows, cols, itemsize, num_cores):
    """Tile rows to ~_TARGET_TILE_BYTES per buffer.

    Prefers a divisor of rows (no ragged tail tile) and, on multi-TC chips,
    a grid-step count divisible by the number of cores so both TCs get
    uniform work.  Blocks are multiples of 8 rows (or the full row extent).
    """
    if rows <= 8:
        return rows  # block dim equals full array dim -> always legal
    target = _TARGET_TILE_BYTES // (cols * itemsize)
    target = max(8, (target // 8) * 8)
    target = min(target, rows)
    target = max(8, (target // 8) * 8)

    best_divisor = None
    br = target
    while br >= 8:
        if rows % br == 0:
            if (rows // br) % num_cores == 0:
                return br
            if best_divisor is None:
                best_divisor = br
        br -= 8
    if best_divisor is not None:
        return best_divisor
    return target  # ragged last tile; Pallas masks the tail writes


@jax.jit
def qop_forward(x_nchw, y_nchw, scale, zero_point):
    """QOp.forward with op=add, mode=QUANT_EVAL.

    x_nchw, y_nchw: float32 arrays of shape (N, C, H, W).
    scale, zero_point: scalar per-tensor quantizer parameters (zp handled as
    float32; pass an integer-valued zp as in torch).
    """
    n, c, h, w = x_nchw.shape
    rows, cols = _choose_layout((n, c, h, w))

    # Elementwise op: a flat reshape preserves element order, so any
    # (rows, cols) factorization of the NCHW tensor is equivalent.
    x2d = x_nchw.reshape(rows, cols)
    y2d = y_nchw.reshape(rows, cols)

    itemsize = jnp.dtype(x2d.dtype).itemsize
    num_cores = _tensorcores_per_chip()
    block_rows = _choose_block_rows(rows, cols, itemsize, num_cores)
    tile_bytes = block_rows * cols * itemsize
    # 3 streams x 2 pipeline buffers x tile, plus headroom; capped for v7x.
    vmem_limit = int(min(_VMEM_CAP_BYTES,
                         max(_VMEM_FLOOR_BYTES, 6 * tile_bytes + (4 << 20))))

    scale_f = jnp.asarray(scale, jnp.float32).reshape(())
    zp_f = jnp.asarray(zero_point, jnp.float32).reshape(())
    inv_scale = jnp.float32(1.0) / scale_f   # exact divide, hoisted out of kernel
    params = jnp.stack([inv_scale, scale_f, QMIN - zp_f, QMAX - zp_f])

    total = rows * cols
    grid = (pl.cdiv(rows, block_rows),)

    out2d = pl.pallas_call(
        _qop_add_fakequant_kernel,
        out_shape=jax.ShapeDtypeStruct((rows, cols), x2d.dtype),
        grid_spec=pltpu.PrefetchScalarGridSpec(
            num_scalar_prefetch=1,        # params -> SMEM once, before the grid
            grid=grid,
            in_specs=[
                pl.BlockSpec((block_rows, cols), lambda i, _: (i, 0)),
                pl.BlockSpec((block_rows, cols), lambda i, _: (i, 0)),
            ],
            out_specs=pl.BlockSpec((block_rows, cols), lambda i, _: (i, 0)),
        ),
        compiler_params=pltpu.CompilerParams(
            dimension_semantics=_grid_semantics(),
            vmem_limit_bytes=vmem_limit,
        ),
        cost_estimate=pl.CostEstimate(
            flops=6 * total,
            transcendentals=0,
            bytes_accessed=3 * total * itemsize,
        ),
    )(params, x2d, y2d)

    # TODO(synk): bf16 / int8 output would cut HBM traffic 17-25% but changes
    # numerics vs torch's fp32 fake-quant output; needs caller buy-in.
    return out2d.reshape(n, c, h, w)


def _reference(x, y, scale, zp):
    # Mirrors torch.fake_quantize_per_tensor_affine (multiply by 1/scale),
    # in the un-folded form so it also validates the clamp-bound folding.
    out = x + y
    inv_scale = jnp.float32(1.0) / scale
    q = jnp.clip(jnp.round(out * inv_scale) + zp, QMIN, QMAX)
    return (q - zp) * scale


if __name__ == "__main__":
    key = jax.random.PRNGKey(0)
    kx, ky = jax.random.split(key)

    # Small NCHW shapes consistent with a conv-activation QOp (residual add)
    N, C, H, W = 2, 4, 16, 16
    x = jax.random.normal(kx, (N, C, H, W), dtype=jnp.float32)
    y = jax.random.normal(ky, (N, C, H, W), dtype=jnp.float32)

    # Deterministic quantizer parameters (symmetric int8 over ~[-4, 4])
    scale = jnp.float32(4.0 / 127.0)
    zero_point = jnp.float32(0.0)

    out = qop_forward(x, y, scale, zero_point)
    out = jax.block_until_ready(out)

    ref = _reference(x, y, scale, zero_point)
    assert out.shape == (N, C, H, W)
    assert jnp.allclose(out, ref, atol=1e-6), "mismatch vs reference"

    print("KERNEL_OK")
</pallas_src>

<mosaic_0001>
module attributes {stable_mosaic.version = 11 : i64} {
  func.func @_qop_add_fakequant_kernel(%arg0: i32, %arg1: memref<4xf32, #tpu.memory_space<smem>>, %arg2: memref<8x256xf32, #tpu.memory_space<vmem>>, %arg3: memref<8x256xf32, #tpu.memory_space<vmem>>, %arg4: memref<8x256xf32, #tpu.memory_space<vmem>>) attributes {dimension_semantics = [#tpu.dimension_semantics<parallel>], iteration_bounds = array<i64: 1>, scalar_prefetch = 1 : i64, scratch_operands = 0 : i64, tpu.core_type = #tpu.core_type<tc>, window_params = [{transform_indices = @transform_0, window_bounds = array<i64: 8, 256>}, {transform_indices = @transform_1, window_bounds = array<i64: 8, 256>}, {transform_indices = @transform_2, window_bounds = array<i64: 8, 256>}]} {
    %c0 = arith.constant 0 : index
    %c0_0 = arith.constant 0 : index
    %0 = vector.load %arg2[%c0, %c0_0] : memref<8x256xf32, #tpu.memory_space<vmem>>, vector<8x256xf32>
    %c0_1 = arith.constant 0 : index
    %c0_2 = arith.constant 0 : index
    %1 = vector.load %arg3[%c0_1, %c0_2] : memref<8x256xf32, #tpu.memory_space<vmem>>, vector<8x256xf32>
    %2 = arith.addf %0, %1 : vector<8x256xf32>
    %c0_3 = arith.constant 0 : index
    %3 = memref.load %arg1[%c0_3] : memref<4xf32, #tpu.memory_space<smem>>
    %c1 = arith.constant 1 : index
    %4 = memref.load %arg1[%c1] : memref<4xf32, #tpu.memory_space<smem>>
    %c2 = arith.constant 2 : index
    %5 = memref.load %arg1[%c2] : memref<4xf32, #tpu.memory_space<smem>>
    %c3 = arith.constant 3 : index
    %6 = memref.load %arg1[%c3] : memref<4xf32, #tpu.memory_space<smem>>
    %7 = vector.broadcast %3 : f32 to vector<8x256xf32>
    %8 = arith.mulf %2, %7 : vector<8x256xf32>
    %9 = math.roundeven %8 : vector<8x256xf32>
    %10 = vector.broadcast %5 : f32 to vector<8x256xf32>
    %11 = arith.maximumf %10, %9 : vector<8x256xf32>
    %12 = vector.broadcast %6 : f32 to vector<8x256xf32>
    %13 = arith.minimumf %12, %11 : vector<8x256xf32>
    %14 = vector.broadcast %4 : f32 to vector<8x256xf32>
    %15 = arith.mulf %13, %14 : vector<8x256xf32>
    %c0_4 = arith.constant 0 : index
    %c0_5 = arith.constant 0 : index
    %16 = vector.load %arg4[%c0_4, %c0_5] : memref<8x256xf32, #tpu.memory_space<vmem>>, vector<8x256xf32>
    tpu.vector_store %arg4[%c0_4, %c0_5], %15 {strides = array<i32>} : memref<8x256xf32, #tpu.memory_space<vmem>>, vector<8x256xf32>,
    return
  }
  func.func @transform_0(%arg0: i32, %arg1: memref<4xf32, #tpu.memory_space<smem>>) -> (i32, i32) {
    %c0_i32 = arith.constant 0 : i32
    %c0_i32_0 = arith.constant 0 : i32
    return %arg0, %c0_i32 : i32, i32
  }
  func.func @transform_1(%arg0: i32, %arg1: memref<4xf32, #tpu.memory_space<smem>>) -> (i32, i32) {
    %c0_i32 = arith.constant 0 : i32
    %c0_i32_0 = arith.constant 0 : i32
    return %arg0, %c0_i32 : i32, i32
  }
  func.func @transform_2(%arg0: i32, %arg1: memref<4xf32, #tpu.memory_space<smem>>) -> (i32, i32) {
    %c0_i32 = arith.constant 0 : i32
    %c0_i32_0 = arith.constant 0 : i32
    return %arg0, %c0_i32 : i32, i32
  }
}

</mosaic_0001>

<llo_original>
// kernel: qop_forward.1
$region0: #{qop_forward.1}
  #allocation0 [shape = 'u32[]', space=smem, size = 0x4, offset = 0x4, fixed_abs, tag = 'smem constant byte address 0x4 - core index']
  #allocation1 [shape = 'u32[72,128]{1,0:T(1,128)}', space=vmem, size = 0x9000, scoped, tag = 'internal scratch']
  #allocation2 [shape = 's32[1]{0}', space=sflag, size = 0x4, scoped, tag = 'scoped memory for qop_forward.1']
  #allocation3 [shape = 'u8[512]{0}', space=smem, size = 0x200, scoped, tag = 'prefetched SMEM operand 0']
  %s0 = inlined_call_operand.vmem [shape: f32[4], index: 0, kind: input, shape index: {}]
  %s1 = inlined_call_operand.vmem [shape: f32[8,256], index: 1, kind: input, shape index: {}]
  %s2 = inlined_call_operand.vmem [shape: f32[8,256], index: 2, kind: input, shape index: {}]
  %s3 = inlined_call_operand.vmem [shape: f32[8,256], index: 3, kind: output, shape index: {}]
  %s4 = sld [smem:[#allocation0]]
  $region18: #{qop_forward.1} parent=0
    _
  %s6 = ssub.s32 1, %s4
  %s7 = scalar_select 0, %s6, %s4
  %s9 = sshll.u32 %s0, 4
  %s10 = int_to_ptr.vmem [resolvable:$true] %s9
  %12 = dma.vmem_to_smem %s10, 16, [#allocation3], [#allocation2]
  %14 = dma.done [#allocation2], 16
  %15 = sfence
  // Predicated region
  $region2: #{qop_forward.1} parent=0 // pred_check
    _
  $region3: #{qop_forward.1} parent=0 // pred_check_branch
    %17 = sbr.rel (0) target = $region5
  $region4: #{qop_forward.1} parent=0 // pred_region
    _
  $region5: #{qop_forward.1} parent=0 // pred_fallthru
    _
  // Predicated region
  $region6: #{qop_forward.1} parent=0 // pred_check
    _
  $region7: #{qop_forward.1} parent=0 // pred_check_branch
    %19 = sbr.rel (0) target = $region9
  $region8: #{qop_forward.1} parent=0 // pred_region
    _
  $region9: #{qop_forward.1} parent=0 // pred_fallthru
    _
  %v20 = vld [vmem:[%s1] sm:$0xff]
  %v21 = vld [vmem:[%s1 + $0x8] sm:$0xff]
  %v22 = vld [vmem:[%s2] sm:$0xff]
  %v23 = vld [vmem:[%s2 + $0x8] sm:$0xff]
  %v24 = vadd.f32 %v20, %v22
  %v25 = vadd.f32 %v21, %v23
  %s26 = sld [smem:[#allocation3]]
  %s27 = sld [smem:[#allocation3 + $0x1]]
  %s28 = sld [smem:[#allocation3 + $0x2]]
  %s29 = sld [smem:[#allocation3 + $0x3]]
  %v30 = vstv %s26
  %v31 = vmul.f32 %v24, %v30
  %v32 = vmul.f32 %v25, %v30
  %v33 = vround.ne.pseudo %v31
  %v34 = vround.ne.pseudo %v32
  %v35 = vstv %s28
  %v36 = vmax.f32 %v35, %v33
  %v37 = vmax.f32 %v35, %v34
  %v38 = vstv %s29
  %v39 = vmin.f32 %v38, %v36
  %v40 = vmin.f32 %v38, %v37
  %v41 = vstv %s27
  %v42 = vmul.f32 %v39, %v41
  %v43 = vmul.f32 %v40, %v41
  %44 = vst [vmem:[%s3] sm:$0xff] %v42
  %45 = vst [vmem:[%s3 + $0x8] sm:$0xff] %v43
  // Predicated region
  $region10: #{qop_forward.1} parent=0 // pred_check
    _
  $region11: #{qop_forward.1} parent=0 // pred_check_branch
    %47 = sbr.rel (0) target = $region13
  $region12: #{qop_forward.1} parent=0 // pred_region
    _
  $region13: #{qop_forward.1} parent=0 // pred_fallthru
    _
  // Predicated region
  $region14: #{qop_forward.1} parent=0 // pred_check
    _
  $region15: #{qop_forward.1} parent=0 // pred_check_branch
    %49 = sbr.rel (0) target = $region17
  $region16: #{qop_forward.1} parent=0 // pred_region
    _
  $region17: #{qop_forward.1} parent=0 // pred_fallthru
    _

</llo_original>
